<compile_context>
chip_gen: v5e
topology: v5e:2x2
jax: 0.10.0
libtpu: 0.0.40
codegen_flags: <defaults>
</compile_context>

<pallas_src>
from functools import partial

import jax
import jax.numpy as jnp
from jax.experimental import pallas as pl
from jax.experimental.pallas import tpu as pltpu


# ---------------------------------------------------------------------------
# Pallas kernel: tiled patch projection (patches @ W_folded + bias)
# ---------------------------------------------------------------------------
def _proj_kernel(x_ref, w_ref, b_ref, o_ref):
    acc = jnp.dot(x_ref[...], w_ref[...], preferred_element_type=jnp.float32)
    o_ref[...] = (acc + b_ref[...]).astype(o_ref.dtype)


# ---------------------------------------------------------------------------
# Fold the Haar DWT + subband concat into the Conv2d weight
# ---------------------------------------------------------------------------
def _fold_haar_into_weight(weight):
    """(E, C*4, P, P) conv weight -> (E, C*(2P)*(2P)) weight over original x."""
    E, C4, P, _ = weight.shape
    C = C4 // 4
    # pytorch_wavelets haar J=1 subband order: LL, (loW,hiH), (hiW,loH), (hiW,hiH)
    H = 0.5 * jnp.array(
        [[[1.0, 1.0], [1.0, 1.0]],
         [[1.0, 1.0], [-1.0, -1.0]],
         [[1.0, -1.0], [1.0, -1.0]],
         [[1.0, -1.0], [-1.0, 1.0]]], dtype=jnp.float32)          # (4, dy, dx)
    w4 = weight.astype(jnp.float32).reshape(E, C, 4, P, P)         # (E, C, s, p, q)
    wf = jnp.einsum('ecspq,syx->ecpyqx', w4, H)                    # (E, C, P, 2, P, 2)
    wf = wf.reshape(E, C, 2 * P, 2 * P)                            # folded conv weight
    return wf.reshape(E, C * 2 * P * 2 * P)                        # K order = (c, dy, dx)


# ---------------------------------------------------------------------------
# WaveEmbed.forward
# ---------------------------------------------------------------------------
@partial(jax.jit, static_argnames=("patch_size", "stride", "pad", "flatten"))
def wave_embed_forward(x, weight, bias, *, patch_size, stride, pad, flatten=True):
    B, C, H, W = x.shape
    E = weight.shape[0]
    P = patch_size
    assert stride == patch_size, "only non-overlapping patch conv supported"
    # TODO(synk): general overlapping conv (stride != kernel_size) not implemented.

    # --- fold the Haar DWT + concat into the projection weight (tiny, one-off) ---
    wmat = _fold_haar_into_weight(weight).T.astype(x.dtype)        # (K, E)
    K = wmat.shape[0]                                              # C * (2P)^2

    # Conv padding on the half-res subband image == 2*pad padding on original x.
    xp = x
    if pad:
        xp = jnp.pad(xp, ((0, 0), (0, 0), (2 * pad, 2 * pad), (2 * pad, 2 * pad)))
    H2, W2 = H // 2 + 2 * pad, W // 2 + 2 * pad                    # subband image size
    nH = (H2 - P) // stride + 1
    nW = (W2 - P) // stride + 1
    PP = 2 * P                                                     # patch size on x
    xp = xp[:, :, : nH * PP, : nW * PP]

    # Patchify original x: (B, C, nH, PP, nW, PP) -> (M, K); K order = (c, dy, dx).
    # TODO(synk): fold this gather into the kernel via a BlockSpec index_map that
    # walks (b, patch-row) tiles to avoid one extra HBM pass over x.
    patches = xp.reshape(B, C, nH, PP, nW, PP)
    patches = patches.transpose(0, 2, 4, 1, 3, 5).reshape(B * nH * nW, K)
    M = patches.shape[0]

    # Lane-dense output: pad embed_dim up to a multiple of 128 (unmasked stores).
    E_pad = ((E + 127) // 128) * 128
    if E_pad != E:
        wmat = jnp.pad(wmat, ((0, 0), (0, E_pad - E)))
        bias_p = jnp.pad(bias, (0, E_pad - E))
    else:
        bias_p = bias
    bias2 = bias_p.reshape(1, E_pad).astype(jnp.float32)

    # Tile M: big tiles for HBM-roofline pipelining, sized well under v7x's
    # 64 MiB VMEM (~2 * (tm*K + tm*E_pad) * 4 bytes double-buffered + weight).
    tm = 512 if M > 512 else M
    grid = (pl.cdiv(M, tm),)

    out = pl.pallas_call(
        _proj_kernel,
        grid=grid,
        in_specs=[
            pl.BlockSpec((tm, K), lambda i: (i, 0)),       # patch tile
            pl.BlockSpec((K, E_pad), lambda i: (0, 0)),    # folded weight (resident)
            pl.BlockSpec((1, E_pad), lambda i: (0, 0)),    # bias (resident)
        ],
        out_specs=pl.BlockSpec((tm, E_pad), lambda i: (i, 0)),
        out_shape=jax.ShapeDtypeStruct((M, E_pad), x.dtype),
        compiler_params=pltpu.CompilerParams(
            dimension_semantics=("parallel",),             # megacore / 2 TCs on v7x
            vmem_limit_bytes=32 * 1024 * 1024,
        ),
    )(patches, wmat, bias2)

    if E_pad != E:
        out = out[:, :E]
    if flatten:
        out = out.reshape(B, nH * nW, E)       # == proj(x).flatten(2).transpose(1, 2)
    else:
        out = out.reshape(B, nH, nW, E).transpose(0, 3, 1, 2)
    # norm_layer=None -> Identity
    return out


# ---------------------------------------------------------------------------
# Pure-JAX reference (explicit Haar DWT + conv) for a correctness self-check
# ---------------------------------------------------------------------------
def _ref_forward(x, weight, bias, *, patch_size, stride, pad, flatten=True):
    B, C, H, W = x.shape
    a = x[:, :, 0::2, 0::2]
    b = x[:, :, 0::2, 1::2]
    c = x[:, :, 1::2, 0::2]
    d = x[:, :, 1::2, 1::2]
    ll = (a + b + c + d) * 0.5
    s1 = (a + b - c - d) * 0.5
    s2 = (a - b + c - d) * 0.5
    s3 = (a - b - c + d) * 0.5
    xw = jnp.stack([ll, s1, s2, s3], axis=2).reshape(B, C * 4, H // 2, W // 2)
    out = jax.lax.conv_general_dilated(
        xw, weight, window_strides=(stride, stride),
        padding=((pad, pad), (pad, pad)),
        dimension_numbers=('NCHW', 'OIHW', 'NCHW'),
        precision=jax.lax.Precision.HIGHEST)
    out = out + bias.reshape(1, -1, 1, 1)
    if flatten:
        out = out.reshape(B, out.shape[1], -1).transpose(0, 2, 1)
    return out


if __name__ == "__main__":
    key = jax.random.PRNGKey(0)
    B, C, H, W = 2, 4, 16, 16
    patch_size, stride, pad = 2, 2, 0
    embed_dim = 32

    k1, k2, k3 = jax.random.split(key, 3)
    x = jax.random.normal(k1, (B, C, H, W), dtype=jnp.float32)
    # Conv2d(in_chans*4, embed_dim, kernel_size=patch_size) parameters
    weight = 0.02 * jax.random.normal(
        k2, (embed_dim, C * 4, patch_size, patch_size), dtype=jnp.float32)
    bias = 0.02 * jax.random.normal(k3, (embed_dim,), dtype=jnp.float32)

    out = wave_embed_forward(
        x, weight, bias, patch_size=patch_size, stride=stride, pad=pad, flatten=True)
    out = jax.block_until_ready(out)

    nH = (H // 2) // patch_size
    nW = (W // 2) // patch_size
    assert out.shape == (B, nH * nW, embed_dim), out.shape

    # correctness self-check against the explicit DWT + conv reference
    ref = _ref_forward(
        x, weight, bias, patch_size=patch_size, stride=stride, pad=pad, flatten=True)
    ref = jax.block_until_ready(ref)
    max_err = float(jnp.max(jnp.abs(out - ref)))
    max_ref = float(jnp.max(jnp.abs(ref)))
    assert max_err <= 1e-2 * max_ref + 1e-5, (max_err, max_ref)

    print("KERNEL_OK")
</pallas_src>

<mosaic_0001>
module attributes {stable_mosaic.version = 11 : i64} {
  func.func @_proj_kernel(%arg0: i32, %arg1: memref<32x64xf32, #tpu.memory_space<vmem>>, %arg2: memref<64x128xf32, #tpu.memory_space<vmem>>, %arg3: memref<1x128xf32, #tpu.memory_space<vmem>>, %arg4: memref<32x128xf32, #tpu.memory_space<vmem>>) attributes {dimension_semantics = [#tpu.dimension_semantics<parallel>], iteration_bounds = array<i64: 1>, scalar_prefetch = 0 : i64, scratch_operands = 0 : i64, tpu.core_type = #tpu.core_type<tc>, window_params = [{transform_indices = @transform_0, window_bounds = array<i64: 32, 64>}, {pipeline_mode = #tpu.pipeline_mode<synchronous>, transform_indices = @transform_1, window_bounds = array<i64: 64, 128>}, {pipeline_mode = #tpu.pipeline_mode<synchronous>, transform_indices = @transform_2, window_bounds = array<i64: 1, 128>}, {transform_indices = @transform_3, window_bounds = array<i64: 32, 128>}]} {
    %c0 = arith.constant 0 : index
    %c0_0 = arith.constant 0 : index
    %0 = vector.load %arg1[%c0, %c0_0] : memref<32x64xf32, #tpu.memory_space<vmem>>, vector<32x64xf32>
    %c0_1 = arith.constant 0 : index
    %c0_2 = arith.constant 0 : index
    %1 = vector.load %arg2[%c0_1, %c0_2] : memref<64x128xf32, #tpu.memory_space<vmem>>, vector<64x128xf32>
    %cst = arith.constant dense<0.000000e+00> : vector<32x128xf32>
    %2 = tpu.matmul %0, %1, %cst {dimension_numbers = #tpu.dot_dimension_numbers<[1], [0], [0], [1], [0, 0, 1, 1], [], []>} : vector<32x64xf32>, vector<64x128xf32>, vector<32x128xf32> -> vector<32x128xf32>
    %c0_3 = arith.constant 0 : index
    %c0_4 = arith.constant 0 : index
    %3 = vector.load %arg3[%c0_3, %c0_4] : memref<1x128xf32, #tpu.memory_space<vmem>>, vector<1x128xf32>
    %4 = vector.broadcast %3 : vector<1x128xf32> to vector<32x128xf32>
    %5 = arith.addf %2, %4 : vector<32x128xf32>
    %c0_5 = arith.constant 0 : index
    %c0_6 = arith.constant 0 : index
    %6 = vector.load %arg4[%c0_5, %c0_6] : memref<32x128xf32, #tpu.memory_space<vmem>>, vector<32x128xf32>
    tpu.vector_store %arg4[%c0_5, %c0_6], %5 {strides = array<i32>} : memref<32x128xf32, #tpu.memory_space<vmem>>, vector<32x128xf32>,
    return
  }
  func.func @transform_0(%arg0: i32) -> (i32, i32) {
    %c0_i32 = arith.constant 0 : i32
    %c0_i32_0 = arith.constant 0 : i32
    return %arg0, %c0_i32 : i32, i32
  }
  func.func @transform_1(%arg0: i32) -> (i32, i32) {
    %c0_i32 = arith.constant 0 : i32
    %c0_i32_0 = arith.constant 0 : i32
    %c0_i32_1 = arith.constant 0 : i32
    return %c0_i32, %c0_i32_0 : i32, i32
  }
  func.func @transform_2(%arg0: i32) -> (i32, i32) {
    %c0_i32 = arith.constant 0 : i32
    %c0_i32_0 = arith.constant 0 : i32
    %c0_i32_1 = arith.constant 0 : i32
    return %c0_i32, %c0_i32_0 : i32, i32
  }
  func.func @transform_3(%arg0: i32) -> (i32, i32) {
    %c0_i32 = arith.constant 0 : i32
    %c0_i32_0 = arith.constant 0 : i32
    return %arg0, %c0_i32 : i32, i32
  }
}

</mosaic_0001>

<llo_original>
// kernel: wave_embed_forward.1
$region0: #{wave_embed_forward.1}
  #allocation0 [shape = 'u32[]', space=smem, size = 0x4, offset = 0x4, fixed_abs, tag = 'smem constant byte address 0x4 - core index']
  #allocation1 [shape = 'u32[72,128]{1,0:T(1,128)}', space=vmem, size = 0x9000, scoped, tag = 'internal scratch']
  %s0 = inlined_call_operand.vmem [shape: f32[32,64], index: 0, kind: input, shape index: {}]
  %s1 = inlined_call_operand.vmem [shape: f32[64,128], index: 1, kind: input, shape index: {}]
  %s2 = inlined_call_operand.vmem [shape: f32[1,128], index: 2, kind: input, shape index: {}]
  %s3 = inlined_call_operand.hbm [shape: f32[32,128], index: 3, kind: output, shape index: {}]
  %s4 = sld [smem:[#allocation0]]
  $region22: #{wave_embed_forward.1} parent=0
    _
  %s6 = ssub.s32 1, %s4
  %s7 = scalar_select 0, %s6, %s4
  $region1: #{wave_embed_forward.1} parent=0
    #allocation2 [shape = 'u8[16384]{0}', space=vmem, size = 0x4000, scoped, tag = 'output window, operand 0, single buffered']
    #allocation3 [shape = 's32[1]{0}', space=sflag, size = 0x4, scoped, tag = 'scoped memory for wave_embed_forward.1']
    %8 = vsyncpa [#allocation3], 0
    // Predicated region
    $region2: #{wave_embed_forward.1} parent=1 // pred_check
      _
    $region3: #{wave_embed_forward.1} parent=1 // pred_check_branch
      %10 = sbr.rel (0) target = $region5
    $region4: #{wave_embed_forward.1} parent=1 // pred_region
      _
    $region5: #{wave_embed_forward.1} parent=1 // pred_fallthru
      _
    // Predicated region
    $region6: #{wave_embed_forward.1} parent=1 // pred_check
      _
    $region7: #{wave_embed_forward.1} parent=1 // pred_check_branch
      %12 = sbr.rel (0) target = $region9
    $region8: #{wave_embed_forward.1} parent=1 // pred_region
      _
    $region9: #{wave_embed_forward.1} parent=1 // pred_fallthru
      _
    // Predicated region
    $region10: #{wave_embed_forward.1} parent=1 // pred_check
      _
    $region11: #{wave_embed_forward.1} parent=1 // pred_check_branch
      %14 = sbr.rel (0) target = $region13
    $region12: #{wave_embed_forward.1} parent=1 // pred_region
      _
    $region13: #{wave_embed_forward.1} parent=1 // pred_fallthru
      _
    %v15 = vld [vmem:[%s0] sm:$0xff]
    %v16 = vld [vmem:[%s0 + $0x8] sm:$0xff]
    %v17 = vld [vmem:[%s0 + $0x10] sm:$0xff]
    %v18 = vld [vmem:[%s0 + $0x18] sm:$0xff]
    %v19 = vld [vmem:[%s1] sm:$0xff]
    %v20 = vld [vmem:[%s1 + $0x8] sm:$0xff]
    %v21 = vld [vmem:[%s1 + $0x10] sm:$0xff]
    %v22 = vld [vmem:[%s1 + $0x18] sm:$0xff]
    %v23 = vld [vmem:[%s1 + $0x20] sm:$0xff]
    %v24 = vld [vmem:[%s1 + $0x28] sm:$0xff]
    %v25 = vld [vmem:[%s1 + $0x30] sm:$0xff]
    %v26 = vld [vmem:[%s1 + $0x38] sm:$0xff]
    %v27 = vld [vmem:[%s2] sm:$0x1]
    %v29 = vperm.slane %v27, 0
    %vm31 = vcmask 523264
    %v33 = vsel %vm31, %v15, 0
    %v36 = vsel %vm31, %v16, 0
    %v39 = vsel %vm31, %v17, 0
    %v42 = vsel %vm31, %v18, 0
    %44 = vmatpush.msra.mxu0 0.0
    %45 = vmatpush.msra.mxu0 0.0
    %46 = vmatpush.msra.mxu0 0.0
    %47 = vmatpush.msra.mxu0 0.0
    %48 = vmatpush.msra.mxu0 0.0
    %49 = vmatpush.msra.mxu0 0.0
    %50 = vmatpush.msra.mxu0 0.0
    %51 = vmatpush.msra.mxu0 0.0
    %52 = vmatpush.msra.mxu0 %v26
    %53 = vmatpush.msra.mxu0 %v25
    %54 = vmatpush.msra.mxu0 %v24
    %55 = vmatpush.msra.mxu0 %v23
    %56 = vmatpush.msra.mxu0 %v22
    %57 = vmatpush.msra.mxu0 %v21
    %58 = vmatpush.msra.mxu0 %v20
    %59 = vmatpush.msra.mxu0 %v19
    %60 = vmatmul.f32.gmra.mxu0 %v33
    %v61 = vpop.f32.mrf.mxu0
    %v62 = vadd.f32 %v29, %v61
    %63 = vmatmul.f32.gmra.mxu0 %v36
    %v64 = vpop.f32.mrf.mxu0
    %v65 = vadd.f32 %v29, %v64
    %66 = vmatmul.f32.gmra.mxu0 %v39
    %v67 = vpop.f32.mrf.mxu0
    %v68 = vadd.f32 %v29, %v67
    %69 = vmatmul.f32.gmra.mxu0 %v42
    %v70 = vpop.f32.mrf.mxu0
    %v71 = vadd.f32 %v29, %v70
    %72 = vdwg.mxu0
    %73 = vst [vmem:[#allocation2] sm:$0xff] %v62
    %74 = vst [vmem:[#allocation2 + $0x8] sm:$0xff] %v65
    %75 = vst [vmem:[#allocation2 + $0x10] sm:$0xff] %v68
    %76 = vst [vmem:[#allocation2 + $0x18] sm:$0xff] %v71
    // Predicated region
    $region14: #{wave_embed_forward.1} parent=1 // pred_check
      _
    $region15: #{wave_embed_forward.1} parent=1 // pred_check_branch
      %78 = sbr.rel (0) target = $region17
    $region16: #{wave_embed_forward.1} parent=1 // pred_region
      %80 = vsyncadd [#allocation3], 0
      %s81 = sshll.u32 [#allocation2], 4
      %s82 = int_to_ptr.vmem [resolvable:$true] %s81
      %s83 = sshll.u32 %s3, 4
      %s84 = int_to_ptr.hbm [resolvable:$true] %s83
      %89 = dma.vmem_to_hbm [thread:$0]  %s82, 512, %s84, [#allocation3], 128, 128, 8
    $region17: #{wave_embed_forward.1} parent=1 // pred_fallthru
      _
    // Predicated region
    $region18: #{wave_embed_forward.1} parent=1 // pred_check
      _
    $region19: #{wave_embed_forward.1} parent=1 // pred_check_branch
      %91 = sbr.rel (0) target = $region21
    $region20: #{wave_embed_forward.1} parent=1 // pred_region
      %93 = dma.done [#allocation3], 512
    $region21: #{wave_embed_forward.1} parent=1 // pred_fallthru
      _
    %94 = vsyncpa [#allocation3], 1

</llo_original>
